<compile_context>
chip_gen: v6e
topology: v6e:2x2x1
jax: 0.10.0
libtpu: 0.0.40
codegen_flags: <defaults>
</compile_context>

<pallas_src>
import functools

import jax
import jax.numpy as jnp
from jax import lax
from jax.experimental import pallas as pl
from jax.experimental.pallas import tpu as pltpu


def _round_up(v, m):
    return (v + m - 1) // m * m


def _temporal_block_kernel(x_ref, w1s_ref, b1s_ref, w2_ref, b2_ref, o_ref,
                           xbuf_ref, h1buf_ref, *,
                           K, dilation, pad, pad_al, Co, per_tap):
    """One (batch, time-tile) grid step.

    x_ref    : (Ci, TL)                   input tile (compute dtype)
    w1s_ref  : per_tap -> (K, 2*Co, Ci)   conv1 taps stacked over the 1x1
               else    -> (2*Co, K*Ci)    downsample (zero-shift tap slot)
    b1s_ref  : (2*Co, 1) f32              [b1 ; bd]
    w2_ref   : per_tap -> (K, Co, Co) else (Co, K*Co)
    b2_ref   : (Co, 1) f32
    o_ref    : (Co, TL)
    xbuf_ref : (Ci, pad_al + TL)  persistent padded input buffer
    h1buf_ref: (Co, pad_al + TL)  persistent padded hidden buffer

    Buffer layout: [ unused | halo(pad) | tile(TL) ], tile stored lane-aligned
    at offset pad_al; the causal halo (last `pad` steps of history) lives at
    [pad_al - pad, pad_al).
    """
    l = pl.program_id(1)
    halo_off = pad_al - pad

    @pl.when(l == 0)
    def _():
        # New batch element: causal history (left zero padding) is all zeros.
        xbuf_ref[:, halo_off:pad_al] = jnp.zeros(
            (xbuf_ref.shape[0], pad), xbuf_ref.dtype)
        h1buf_ref[:, halo_off:pad_al] = jnp.zeros(
            (h1buf_ref.shape[0], pad), h1buf_ref.dtype)

    x = x_ref[...]                                       # (Ci, TL)
    TL = x.shape[1]

    def causal_conv(buf_ref, blk, w_ref, bias):
        """Causal dilated conv of the current tile via the persistent buffer.
        Returns the f32 pre-activation (rows, TL)."""
        # Lane-aligned store of the tile (pad_al, TL multiples of 128).
        buf_ref[:, pad_al:pad_al + TL] = blk
        if per_tap:
            # Per-tap MXU accumulation: no materialized im2col.  Tap K-1
            # (zero time shift) reuses the in-register tile.
            acc = bias + jnp.dot(w_ref[K - 1], blk,
                                 preferred_element_type=jnp.float32)
            for k in range(K - 1):
                tap = buf_ref[:, halo_off + k * dilation:
                              halo_off + k * dilation + TL]
                acc = acc + jnp.dot(w_ref[k], tap,
                                    preferred_element_type=jnp.float32)
        else:
            # Small-channel path: stack the K taps so one matmul has a K*C
            # contraction.  Taps come straight from the persistent buffer --
            # no halo concat / padded-buffer rebuild per step.
            cols = jnp.concatenate(
                [buf_ref[:, halo_off + k * dilation:
                         halo_off + k * dilation + TL] for k in range(K)],
                axis=0)                                  # (K*C, TL)
            acc = jnp.dot(w_ref[...], cols,
                          preferred_element_type=jnp.float32) + bias
        # Carry the last `pad` time steps as the next tile's causal halo
        # (sourced from the buffer, so pad > TL also works).
        buf_ref[:, halo_off:pad_al] = buf_ref[:, pad_al + TL - pad:pad_al + TL]
        return acc

    # ---- conv1 + fused residual 1x1 (stacked output rows): MXU --------------
    z1 = causal_conv(xbuf_ref, x, w1s_ref, b1s_ref[...])    # (2*Co, TL) f32
    h1 = jnp.maximum(z1[:Co], 0.0)
    res = z1[Co:]
    # TODO(synk): nn.Dropout is identity here (eval semantics); training-mode
    # stochastic masking (pltpu.prng_*) is intentionally omitted.

    # ---- conv2 ---------------------------------------------------------------
    z2 = causal_conv(h1buf_ref, h1.astype(x.dtype), w2_ref, b2_ref[...])
    h2 = jnp.maximum(z2, 0.0)

    o_ref[...] = jnp.maximum(h2 + res, 0.0).astype(o_ref.dtype)


def _default_tl_and_vmem():
    """Generation-aware defaults.  v5e/v6e (128 MiB physical VMEM): big tiles
    + 96 MiB limit.  v7x (64 MiB physical): TL<=1024, 48 MiB limit."""
    try:
        vmem_cap = pltpu.get_tpu_info().vmem_capacity_bytes
    except Exception:
        vmem_cap = 64 * 1024 * 1024                      # conservative fallback
    if vmem_cap >= 96 * 1024 * 1024:
        return 2048, 96 * 1024 * 1024
    return 1024, 48 * 1024 * 1024


def temporal_block(x, w1, b1, w2, b2, wd=None, bd=None, *, kernel_size,
                   dilation, compute_dtype=jnp.bfloat16, time_tile=None,
                   vmem_limit_bytes=None, per_tap=None):
    """TemporalBlock forward (eval semantics; dropout = identity).

    x  : (N, C_in, L)
    w1 : (C_out, C_in,  K), b1: (C_out,)        PyTorch Conv1d layouts
    w2 : (C_out, C_out, K), b2: (C_out,)
    wd : (C_out, C_in,  1), bd: (C_out,)        1x1 downsample conv, or None
                                                 (None => identity residual)
    Returns (N, C_out, L) in `compute_dtype`.
    """
    N, C_in, L = x.shape
    C_out = w1.shape[0]
    K = kernel_size
    pad = (K - 1) * dilation
    assert pad > 0, "kernel_size must be >= 2 (canonical TCN block)"

    if wd is None:                       # n_inputs == n_outputs: identity res
        assert C_in == C_out
        wd = jnp.eye(C_out, dtype=jnp.float32)[:, :, None]
        bd = jnp.zeros((C_out,), jnp.float32)

    f32 = jnp.dtype(compute_dtype) == jnp.dtype(jnp.float32)
    sub = 8 if f32 else 16                               # sublane packing
    Ci = _round_up(C_in, sub)
    Co = _round_up(C_out, sub)

    auto_tl, auto_vmem = _default_tl_and_vmem()
    time_tile = auto_tl if time_tile is None else time_tile
    vmem_limit_bytes = auto_vmem if vmem_limit_bytes is None else vmem_limit_bytes

    TL = min(_round_up(time_tile, 128), _round_up(L, 128))   # lane-dense tile
    Lp = _round_up(L, TL)
    n_l = Lp // TL
    pad_al = _round_up(pad, 128)         # tile stored lane-aligned past halo

    if per_tap is None:
        # Per-tap accumulation once a single tap already fills the MXU
        # contraction; otherwise stack taps from the persistent buffer.
        per_tap = min(Ci, Co) >= 128

    # ---- pack weights: (K, rows, C_pad) tap-major ----------------------------
    def pack_taps(w, rows, ci_p):
        O, I, Kk = w.shape
        out = jnp.zeros((Kk, rows, ci_p), compute_dtype)
        return out.at[:, :O, :I].set(
            jnp.transpose(w, (2, 0, 1)).astype(compute_dtype))

    # conv1 stacked with the 1x1 downsample (zero-shift tap K-1 slot).
    w1t = jnp.zeros((K, 2 * Co, Ci), compute_dtype)
    w1t = w1t.at[:, :C_out, :C_in].set(
        jnp.transpose(w1, (2, 0, 1)).astype(compute_dtype))
    w1t = w1t.at[K - 1, Co:Co + C_out, :C_in].set(
        wd.reshape(C_out, C_in).astype(compute_dtype))
    w2t = pack_taps(w2, Co, Co)

    if per_tap:
        w1s, w2p = w1t, w2t                                   # (K, rows, C)
    else:                                 # (rows, K*C): column block k = tap k
        w1s = jnp.transpose(w1t, (1, 0, 2)).reshape(2 * Co, K * Ci)
        w2p = jnp.transpose(w2t, (1, 0, 2)).reshape(Co, K * Co)

    def pack_bias(b):
        return jnp.zeros((Co, 1), jnp.float32).at[:b.shape[0], 0].set(
            b.astype(jnp.float32))

    b1s = jnp.concatenate([pack_bias(b1), pack_bias(bd)], axis=0)  # (2Co, 1)
    b2p = pack_bias(b2)

    # ---- pad activations: channels -> sublane multiple, time -> lane tiles --
    xp = jnp.zeros((N, Ci, Lp), compute_dtype).at[:, :C_in, :L].set(
        x.astype(compute_dtype))

    kern = functools.partial(_temporal_block_kernel, K=K, dilation=dilation,
                             pad=pad, pad_al=pad_al, Co=Co, per_tap=per_tap)

    def full_spec(a):
        # Grid-invariant (weights / biases): fetched once, full array in VMEM.
        if a.ndim == 2:
            return pl.BlockSpec(a.shape, lambda n, l: (0, 0))
        return pl.BlockSpec(a.shape, lambda n, l: (0, 0, 0))

    y = pl.pallas_call(
        kern,
        out_shape=jax.ShapeDtypeStruct((N, Co, Lp), compute_dtype),
        grid_spec=pltpu.PrefetchScalarGridSpec(
            num_scalar_prefetch=0,
            grid=(N, n_l),
            in_specs=[
                pl.BlockSpec((None, Ci, TL), lambda n, l: (n, 0, l)),  # x tile
                full_spec(w1s), full_spec(b1s), full_spec(w2p), full_spec(b2p),
            ],
            out_specs=pl.BlockSpec((None, Co, TL), lambda n, l: (n, 0, l)),
            scratch_shapes=[
                pltpu.VMEM((Ci, pad_al + TL), compute_dtype),  # x buffer+halo
                pltpu.VMEM((Co, pad_al + TL), compute_dtype),  # h1 buffer+halo
            ],
        ),
        compiler_params=pltpu.CompilerParams(
            # Batch axis megacore-shardable; time stays sequential because the
            # causal halo is carried in scratch across time tiles.
            dimension_semantics=("parallel", "arbitrary"),
            vmem_limit_bytes=vmem_limit_bytes,
        ),
    )(xp, w1s, b1s, w2p, b2p)

    # Padded tail columns / channels hold garbage -- slice them away here.
    return y[:, :C_out, :L]


def _reference(x, w1, b1, w2, b2, wd, bd, *, kernel_size, dilation):
    """Pure-JAX reference mimicking the PyTorch module (eval mode)."""
    pad = (kernel_size - 1) * dilation
    L = x.shape[-1]
    dn = ("NCH", "OIH", "NCH")

    def conv(inp, w, b, dil, p):
        y = lax.conv_general_dilated(inp, w, window_strides=(1,),
                                     padding=[(p, p)], rhs_dilation=(dil,),
                                     dimension_numbers=dn)
        y = y[:, :, :L] if p > 0 else y                  # chomp
        return y + b[None, :, None]

    h1 = jax.nn.relu(conv(x, w1, b1, dilation, pad))
    h2 = jax.nn.relu(conv(h1, w2, b2, dilation, pad))
    res = conv(x, wd, bd, 1, 0)                          # 1x1 downsample
    return jax.nn.relu(h2 + res)


if __name__ == "__main__":
    # Small shapes consistent with the module's forward.
    N, C_in, C_out = 2, 4, 8
    kernel_size, dilation = 3, 2

    key = jax.random.PRNGKey(0)
    ks = jax.random.split(key, 7)
    # PyTorch layouts; weights ~ N(0, 0.01) as in init_weights.
    w1 = 0.01 * jax.random.normal(ks[1], (C_out, C_in, kernel_size), jnp.float32)
    w2 = 0.01 * jax.random.normal(ks[2], (C_out, C_out, kernel_size), jnp.float32)
    wd = 0.01 * jax.random.normal(ks[3], (C_out, C_in, 1), jnp.float32)
    b1 = 0.1 * jax.random.normal(ks[4], (C_out,), jnp.float32)
    b2 = 0.1 * jax.random.normal(ks[5], (C_out,), jnp.float32)
    bd = 0.1 * jax.random.normal(ks[6], (C_out,), jnp.float32)

    def check(L, time_tile, compute_dtype, per_tap, tol, tag):
        x = jax.random.normal(ks[0], (N, C_in, L), jnp.float32)
        ref = _reference(x, w1, b1, w2, b2, wd, bd,
                         kernel_size=kernel_size, dilation=dilation)
        out = temporal_block(x, w1, b1, w2, b2, wd, bd,
                             kernel_size=kernel_size, dilation=dilation,
                             compute_dtype=compute_dtype,
                             time_tile=time_tile, per_tap=per_tap)
        out = jax.block_until_ready(out)
        assert out.shape == (N, C_out, L), tag
        assert jnp.allclose(out.astype(jnp.float32), ref,
                            atol=tol, rtol=tol), f"mismatch: {tag}"

    # Single time tile, both compute paths, f32 exact-ish check.
    check(16, None, jnp.float32, None, 1e-5, "f32 auto (im2col path)")
    check(16, None, jnp.float32, True, 1e-5, "f32 per-tap path")
    # Multi time tile: exercises the carried causal halo across tiles.
    check(300, 128, jnp.float32, None, 1e-5, "f32 multi-tile im2col")
    check(300, 128, jnp.float32, True, 1e-5, "f32 multi-tile per-tap")
    # bf16 path (MXU-native inputs, f32 accumulation): loose check.
    check(16, None, jnp.bfloat16, None, 3e-2, "bf16 auto")

    print("KERNEL_OK")
</pallas_src>

<mosaic_0001>
module attributes {stable_mosaic.version = 11 : i64} {
  func.func @_temporal_block_kernel(%arg0: i32, %arg1: i32, %arg2: memref<1x8x128xf32, #tpu.memory_space<vmem>>, %arg3: memref<16x24xf32, #tpu.memory_space<vmem>>, %arg4: memref<16x1xf32, #tpu.memory_space<vmem>>, %arg5: memref<8x24xf32, #tpu.memory_space<vmem>>, %arg6: memref<8x1xf32, #tpu.memory_space<vmem>>, %arg7: memref<1x8x128xf32, #tpu.memory_space<vmem>>, %arg8: memref<8x256xf32, #tpu.memory_space<vmem>>, %arg9: memref<8x256xf32, #tpu.memory_space<vmem>>) attributes {dimension_semantics = [#tpu.dimension_semantics<parallel>, #tpu.dimension_semantics<arbitrary>], iteration_bounds = array<i64: 2, 1>, scalar_prefetch = 0 : i64, scratch_operands = 2 : i64, tpu.core_type = #tpu.core_type<tc>, window_params = [{transform_indices = @transform_0, window_bounds = array<i64: 1, 8, 128>}, {pipeline_mode = #tpu.pipeline_mode<synchronous>, transform_indices = @transform_1, window_bounds = array<i64: 16, 24>}, {pipeline_mode = #tpu.pipeline_mode<synchronous>, transform_indices = @transform_2, window_bounds = array<i64: 16, 1>}, {pipeline_mode = #tpu.pipeline_mode<synchronous>, transform_indices = @transform_3, window_bounds = array<i64: 8, 24>}, {pipeline_mode = #tpu.pipeline_mode<synchronous>, transform_indices = @transform_4, window_bounds = array<i64: 8, 1>}, {transform_indices = @transform_5, window_bounds = array<i64: 1, 8, 128>}]} {
    %c0_i32 = arith.constant 0 : i32
    %0 = arith.cmpi eq, %arg1, %c0_i32 : i32
    %1 = arith.extui %0 : i1 to i32
    %c0_i32_0 = arith.constant 0 : i32
    %2 = arith.cmpi ne, %1, %c0_i32_0 : i32
    scf.if %2 {
      %cst_38 = arith.constant 0.000000e+00 : f32
      %41 = vector.broadcast %cst_38 : f32 to vector<8x4xf32>
      %c0_39 = arith.constant 0 : index
      %c124_40 = arith.constant 124 : index
      %42 = vector.load %arg8[%c0_39, %c124_40] : memref<8x256xf32, #tpu.memory_space<vmem>>, vector<8x4xf32>
      tpu.vector_store %arg8[%c0_39, %c124_40], %41 {strides = array<i32>} : memref<8x256xf32, #tpu.memory_space<vmem>>, vector<8x4xf32>,
      %cst_41 = arith.constant 0.000000e+00 : f32
      %43 = vector.broadcast %cst_41 : f32 to vector<8x4xf32>
      %c0_42 = arith.constant 0 : index
      %c124_43 = arith.constant 124 : index
      %44 = vector.load %arg9[%c0_42, %c124_43] : memref<8x256xf32, #tpu.memory_space<vmem>>, vector<8x4xf32>
      tpu.vector_store %arg9[%c0_42, %c124_43], %43 {strides = array<i32>} : memref<8x256xf32, #tpu.memory_space<vmem>>, vector<8x4xf32>,
    } else {
    }
    %c0 = arith.constant 0 : index
    %c0_1 = arith.constant 0 : index
    %c0_2 = arith.constant 0 : index
    %3 = vector.load %arg2[%c0, %c0_1, %c0_2] : memref<1x8x128xf32, #tpu.memory_space<vmem>>, vector<1x8x128xf32>
    %4 = vector.shape_cast %3 : vector<1x8x128xf32> to vector<8x128xf32>
    %c0_3 = arith.constant 0 : index
    %c0_4 = arith.constant 0 : index
    %5 = vector.load %arg4[%c0_3, %c0_4] : memref<16x1xf32, #tpu.memory_space<vmem>>, vector<16x1xf32>
    %c0_5 = arith.constant 0 : index
    %c128 = arith.constant 128 : index
    %6 = vector.load %arg8[%c0_5, %c128] : memref<8x256xf32, #tpu.memory_space<vmem>>, vector<8x128xf32>
    tpu.vector_store %arg8[%c0_5, %c128], %4 {strides = array<i32>} : memref<8x256xf32, #tpu.memory_space<vmem>>, vector<8x128xf32>,
    %c0_6 = arith.constant 0 : index
    %c124 = arith.constant 124 : index
    %7 = vector.load %arg8[%c0_6, %c124] : memref<8x256xf32, #tpu.memory_space<vmem>>, vector<8x128xf32>
    %c0_7 = arith.constant 0 : index
    %c126 = arith.constant 126 : index
    %8 = vector.load %arg8[%c0_7, %c126] : memref<8x256xf32, #tpu.memory_space<vmem>>, vector<8x128xf32>
    %c0_8 = arith.constant 0 : index
    %c128_9 = arith.constant 128 : index
    %9 = vector.load %arg8[%c0_8, %c128_9] : memref<8x256xf32, #tpu.memory_space<vmem>>, vector<8x128xf32>
    %10 = tpu.concatenate %7, %8, %9 in 0 : vector<8x128xf32>, vector<8x128xf32>, vector<8x128xf32> -> vector<24x128xf32>
    %c0_10 = arith.constant 0 : index
    %c0_11 = arith.constant 0 : index
    %11 = vector.load %arg3[%c0_10, %c0_11] : memref<16x24xf32, #tpu.memory_space<vmem>>, vector<16x24xf32>
    %cst = arith.constant dense<0.000000e+00> : vector<16x128xf32>
    %12 = tpu.matmul %11, %10, %cst {dimension_numbers = #tpu.dot_dimension_numbers<[1], [0], [0], [1], [0, 0, 1, 1], [], []>} : vector<16x24xf32>, vector<24x128xf32>, vector<16x128xf32> -> vector<16x128xf32>
    %13 = vector.broadcast %5 : vector<16x1xf32> to vector<16x128xf32>
    %14 = arith.addf %12, %13 : vector<16x128xf32>
    %c0_12 = arith.constant 0 : index
    %c252 = arith.constant 252 : index
    %15 = vector.load %arg8[%c0_12, %c252] : memref<8x256xf32, #tpu.memory_space<vmem>>, vector<8x4xf32>
    %c0_13 = arith.constant 0 : index
    %c124_14 = arith.constant 124 : index
    %16 = vector.load %arg8[%c0_13, %c124_14] : memref<8x256xf32, #tpu.memory_space<vmem>>, vector<8x4xf32>
    tpu.vector_store %arg8[%c0_13, %c124_14], %15 {strides = array<i32>} : memref<8x256xf32, #tpu.memory_space<vmem>>, vector<8x4xf32>,
    %17 = vector.extract_strided_slice %14 {offsets = [0, 0], sizes = [8, 128], strides = [1, 1]} : vector<16x128xf32> to vector<8x128xf32>
    %cst_15 = arith.constant 0.000000e+00 : f32
    %18 = vector.broadcast %cst_15 : f32 to vector<8x128xf32>
    %19 = arith.maximumf %17, %18 : vector<8x128xf32>
    %20 = vector.extract_strided_slice %14 {offsets = [8, 0], sizes = [8, 128], strides = [1, 1]} : vector<16x128xf32> to vector<8x128xf32>
    %c0_16 = arith.constant 0 : index
    %c0_17 = arith.constant 0 : index
    %21 = vector.load %arg6[%c0_16, %c0_17] : memref<8x1xf32, #tpu.memory_space<vmem>>, vector<8x1xf32>
    %c0_18 = arith.constant 0 : index
    %c128_19 = arith.constant 128 : index
    %22 = vector.load %arg9[%c0_18, %c128_19] : memref<8x256xf32, #tpu.memory_space<vmem>>, vector<8x128xf32>
    tpu.vector_store %arg9[%c0_18, %c128_19], %19 {strides = array<i32>} : memref<8x256xf32, #tpu.memory_space<vmem>>, vector<8x128xf32>,
    %c0_20 = arith.constant 0 : index
    %c124_21 = arith.constant 124 : index
    %23 = vector.load %arg9[%c0_20, %c124_21] : memref<8x256xf32, #tpu.memory_space<vmem>>, vector<8x128xf32>
    %c0_22 = arith.constant 0 : index
    %c126_23 = arith.constant 126 : index
    %24 = vector.load %arg9[%c0_22, %c126_23] : memref<8x256xf32, #tpu.memory_space<vmem>>, vector<8x128xf32>
    %c0_24 = arith.constant 0 : index
    %c128_25 = arith.constant 128 : index
    %25 = vector.load %arg9[%c0_24, %c128_25] : memref<8x256xf32, #tpu.memory_space<vmem>>, vector<8x128xf32>
    %26 = tpu.concatenate %23, %24, %25 in 0 : vector<8x128xf32>, vector<8x128xf32>, vector<8x128xf32> -> vector<24x128xf32>
    %c0_26 = arith.constant 0 : index
    %c0_27 = arith.constant 0 : index
    %27 = vector.load %arg5[%c0_26, %c0_27] : memref<8x24xf32, #tpu.memory_space<vmem>>, vector<8x24xf32>
    %cst_28 = arith.constant dense<0.000000e+00> : vector<8x128xf32>
    %28 = tpu.matmul %27, %26, %cst_28 {dimension_numbers = #tpu.dot_dimension_numbers<[1], [0], [0], [1], [0, 0, 1, 1], [], []>} : vector<8x24xf32>, vector<24x128xf32>, vector<8x128xf32> -> vector<8x128xf32>
    %29 = vector.broadcast %21 : vector<8x1xf32> to vector<8x128xf32>
    %30 = arith.addf %28, %29 : vector<8x128xf32>
    %c0_29 = arith.constant 0 : index
    %c252_30 = arith.constant 252 : index
    %31 = vector.load %arg9[%c0_29, %c252_30] : memref<8x256xf32, #tpu.memory_space<vmem>>, vector<8x4xf32>
    %c0_31 = arith.constant 0 : index
    %c124_32 = arith.constant 124 : index
    %32 = vector.load %arg9[%c0_31, %c124_32] : memref<8x256xf32, #tpu.memory_space<vmem>>, vector<8x4xf32>
    tpu.vector_store %arg9[%c0_31, %c124_32], %31 {strides = array<i32>} : memref<8x256xf32, #tpu.memory_space<vmem>>, vector<8x4xf32>,
    %cst_33 = arith.constant 0.000000e+00 : f32
    %33 = vector.broadcast %cst_33 : f32 to vector<8x128xf32>
    %34 = arith.maximumf %30, %33 : vector<8x128xf32>
    %35 = arith.addf %34, %20 : vector<8x128xf32>
    %cst_34 = arith.constant 0.000000e+00 : f32
    %36 = vector.broadcast %cst_34 : f32 to vector<8x128xf32>
    %37 = arith.maximumf %35, %36 : vector<8x128xf32>
    %c0_35 = arith.constant 0 : index
    %c0_36 = arith.constant 0 : index
    %c0_37 = arith.constant 0 : index
    %38 = vector.load %arg7[%c0_35, %c0_36, %c0_37] : memref<1x8x128xf32, #tpu.memory_space<vmem>>, vector<1x8x128xf32>
    %39 = vector.shape_cast %38 : vector<1x8x128xf32> to vector<8x128xf32>
    %40 = vector.shape_cast %37 : vector<8x128xf32> to vector<1x8x128xf32>
    tpu.vector_store %arg7[%c0_35, %c0_36, %c0_37], %40 {strides = array<i32>} : memref<1x8x128xf32, #tpu.memory_space<vmem>>, vector<1x8x128xf32>,
    return
  }
  func.func @transform_0(%arg0: i32, %arg1: i32) -> (i32, i32, i32) {
    %c0_i32 = arith.constant 0 : i32
    %c0_i32_0 = arith.constant 0 : i32
    return %arg0, %c0_i32, %arg1 : i32, i32, i32
  }
  func.func @transform_1(%arg0: i32, %arg1: i32) -> (i32, i32) {
    %c0_i32 = arith.constant 0 : i32
    %c0_i32_0 = arith.constant 0 : i32
    %c0_i32_1 = arith.constant 0 : i32
    return %c0_i32, %c0_i32_0 : i32, i32
  }
  func.func @transform_2(%arg0: i32, %arg1: i32) -> (i32, i32) {
    %c0_i32 = arith.constant 0 : i32
    %c0_i32_0 = arith.constant 0 : i32
    %c0_i32_1 = arith.constant 0 : i32
    return %c0_i32, %c0_i32_0 : i32, i32
  }
  func.func @transform_3(%arg0: i32, %arg1: i32) -> (i32, i32) {
    %c0_i32 = arith.constant 0 : i32
    %c0_i32_0 = arith.constant 0 : i32
    %c0_i32_1 = arith.constant 0 : i32
    return %c0_i32, %c0_i32_0 : i32, i32
  }
  func.func @transform_4(%arg0: i32, %arg1: i32) -> (i32, i32) {
    %c0_i32 = arith.constant 0 : i32
    %c0_i32_0 = arith.constant 0 : i32
    %c0_i32_1 = arith.constant 0 : i32
    return %c0_i32, %c0_i32_0 : i32, i32
  }
  func.func @transform_5(%arg0: i32, %arg1: i32) -> (i32, i32, i32) {
    %c0_i32 = arith.constant 0 : i32
    %c0_i32_0 = arith.constant 0 : i32
    return %arg0, %c0_i32, %arg1 : i32, i32, i32
  }
}

</mosaic_0001>

<llo_original>
// kernel: tpu_custom_call.1
$region0: #{tpu_custom_call.1}
  #allocation0 [shape = 'u32[]', space=smem, size = 0x4, offset = 0x4, fixed_abs, tag = 'smem constant byte address 0x4 - core index']
  #allocation1 [shape = 'u32[144,128]{1,0:T(1,128)}', space=vmem, size = 0x12000, scoped, tag = 'internal scratch']
  #allocation2 [shape = 'f32[8,256]{1,0:T(8,128)}', space=vmem, size = 0x2000, scoped, tag = 'scratch operand']
  #allocation3 [shape = 'f32[8,256]{1,0:T(8,128)}', space=vmem, size = 0x2000, scoped, tag = 'scratch operand']
  %s0 = inlined_call_operand.vmem [shape: f32[2,8,128], index: 0, kind: input, shape index: {}]
  %s1 = inlined_call_operand.hbm [shape: f32[16,24], index: 1, kind: input, shape index: {}]
  %s2 = inlined_call_operand.vmem [shape: f32[16,1], index: 2, kind: input, shape index: {}]
  %s3 = inlined_call_operand.vmem [shape: f32[8,24], index: 3, kind: input, shape index: {}]
  %s4 = inlined_call_operand.vmem [shape: f32[8,1], index: 4, kind: input, shape index: {}]
  %s5 = inlined_call_operand.hbm [shape: f32[2,8,128], index: 5, kind: output, shape index: {}]
  %s6 = sld [smem:[#allocation0]]
  $region61: #{tpu_custom_call.1} parent=0
    _
  %s8 = ssub.s32 1, %s6
  %s9 = scalar_select 0, %s8, %s6
  $region1: #{tpu_custom_call.1} parent=0
    #allocation4 [shape = 'u8[8192]{0}', space=vmem, size = 0x2000, scoped, tag = 'input window, operand 1, single buffered']
    #allocation5 [shape = 's32[2]{0}', space=sflag, size = 0x8, scoped, tag = 'scoped memory for tpu_custom_call.1']
    #allocation6 [shape = 's32[2]{0}', space=sflag, size = 0x8, scoped, tag = 'scoped memory for tpu_custom_call.1']
    #allocation7 [shape = 'u8[8192]{0}', space=vmem, size = 0x2000, scoped, tag = 'output window, operand 0']
    %10 = vsyncpa [#allocation5], 0
    %11 = vsyncpa [#allocation6], 0
    %s12 = scalar_lea.sflag [#allocation6], 1
    %13 = vsyncpa %s12, 0
    loop: start=0, step=1, limit=4
    $region2: #{tpu_custom_call.1} parent=1 // loop_pre_header
      _
    $region3: #{tpu_custom_call.1} parent=1 // loop_header
      %s15 = sphi 0, %s19
      %p16 = scmp.ge.s32.totalorder %s15, 4
      %s22 = sphi 0, %s34
      %s23 = sphi 0, %s30
      %s24 = sphi 0, %s22
      %s25 = sphi 0, %s23
      %s26 = sphi 0, %s24
      %s27 = sphi 0, %s25
      %s39 = sphi 0, %s41
      %s42 = sphi 0, %s39
      %s43 = sphi 0, %s42
      %s59 = sphi 0, %s43
      %s63 = sphi 0, %s63
      %s65 = sphi 0, %s63
      %s66 = sphi 0, %s65
      %s80 = sphi 0, %s66
      %s84 = sphi 0, %s84
      %s86 = sphi 0, %s84
      %s87 = sphi 0, %s86
      %s101 = sphi 0, %s87
      %s105 = sphi 0, %s105
      %s107 = sphi 0, %s105
      %s108 = sphi 0, %s107
      %s122 = sphi 0, %s108
      %s126 = sphi 0, %s126
      %s128 = sphi 0, %s126
      %s129 = sphi 0, %s128
      %s143 = sphi 0, %s129
      %s151 = sphi 0, %s153
      %s154 = sphi 0, %s151
      %s155 = sphi 0, %s154
      %s171 = sphi 0, %s155
    $region4: #{tpu_custom_call.1} parent=1 // loop_header_branch
      %18 = sbr.rel (%p16) target = $region8
    $region5: #{tpu_custom_call.1} parent=1 // loop_body
      %s20 = ssub.s32 %s15, 1
      %s21 = ssub.s32 %s15, 2
      %s28 = sadd.s32 1, %s23
      %p29 = scmp.ge.s32.totalorder %s28, 1
      %s30 = scalar_select %p29, 0, %s28
      %s31 = sadd.s32 1, %s22
      %s32 = scalar_select %p29, %s31, %s22
      %p33 = scmp.ge.s32.totalorder %s32, 2
      %s34 = scalar_select %p33, 0, %s32
      %s35 = ssub.s32 %s22, %s34
      %s36 = ssub.s32 %s23, %s30
      %s37 = sor.u32 %s35, %s36
      %p38 = scmp.eq.s32.totalorder %s37, 0
      %s40 = sadd.s32 %s39, 1
      %s41 = scalar_select %p38, %s39, %s40
      %p44 = pneg %p38
      %p45 = scmp.eq.s32.totalorder %s15, 1
      %p46 = por %p44, %p45
      %p47 = scmp.ne.s32.totalorder %s39, %s42
      %p48 = scmp.eq.s32.totalorder %s15, 0
      %p49 = por %p47, %p48
      %p50 = scmp.ne.s32.totalorder %s39, %s42
      %p51 = scmp.eq.s32.totalorder %s20, 1
      %p52 = por %p50, %p51
      %p53 = scmp.ne.s32.totalorder %s42, %s43
      %p54 = scmp.eq.s32.totalorder %s20, 0
      %p55 = por %p53, %p54
      %p56 = scmp.ne.s32.totalorder %s42, %s43
      %p57 = scmp.eq.s32.totalorder %s21, 1
      %p58 = por %p56, %p57
      %p60 = scmp.ne.s32.totalorder %s43, %s59
      %p61 = scmp.eq.s32.totalorder %s21, 0
      %p62 = por %p60, %p61
      %s64 = sadd.s32 %s63, 1
      %p67 = scmp.eq.s32.totalorder %s15, 1
      %p68 = scmp.ne.s32.totalorder %s63, %s65
      %p69 = scmp.eq.s32.totalorder %s15, 0
      %p70 = por %p68, %p69
      %p71 = scmp.ne.s32.totalorder %s63, %s65
      %p72 = scmp.eq.s32.totalorder %s20, 1
      %p73 = por %p71, %p72
      %p74 = scmp.ne.s32.totalorder %s65, %s66
      %p75 = scmp.eq.s32.totalorder %s20, 0
      %p76 = por %p74, %p75
      %p77 = scmp.ne.s32.totalorder %s65, %s66
      %p78 = scmp.eq.s32.totalorder %s21, 1
      %p79 = por %p77, %p78
      %p81 = scmp.ne.s32.totalorder %s66, %s80
      %p82 = scmp.eq.s32.totalorder %s21, 0
      %p83 = por %p81, %p82
      %s85 = sadd.s32 %s84, 1
      %p88 = scmp.eq.s32.totalorder %s15, 1
      %p89 = scmp.ne.s32.totalorder %s84, %s86
      %p90 = scmp.eq.s32.totalorder %s15, 0
      %p91 = por %p89, %p90
      %p92 = scmp.ne.s32.totalorder %s84, %s86
      %p93 = scmp.eq.s32.totalorder %s20, 1
      %p94 = por %p92, %p93
      %p95 = scmp.ne.s32.totalorder %s86, %s87
      %p96 = scmp.eq.s32.totalorder %s20, 0
      %p97 = por %p95, %p96
      %p98 = scmp.ne.s32.totalorder %s86, %s87
      %p99 = scmp.eq.s32.totalorder %s21, 1
      %p100 = por %p98, %p99
      %p102 = scmp.ne.s32.totalorder %s87, %s101
      %p103 = scmp.eq.s32.totalorder %s21, 0
      %p104 = por %p102, %p103
      %s106 = sadd.s32 %s105, 1
      %p109 = scmp.eq.s32.totalorder %s15, 1
      %p110 = scmp.ne.s32.totalorder %s105, %s107
      %p111 = scmp.eq.s32.totalorder %s15, 0
      %p112 = por %p110, %p111
      %p113 = scmp.ne.s32.totalorder %s105, %s107
      %p114 = scmp.eq.s32.totalorder %s20, 1
      %p115 = por %p113, %p114
      %p116 = scmp.ne.s32.totalorder %s107, %s108
      %p117 = scmp.eq.s32.totalorder %s20, 0
      %p118 = por %p116, %p117
      %p119 = scmp.ne.s32.totalorder %s107, %s108
      %p120 = scmp.eq.s32.totalorder %s21, 1
      %p121 = por %p119, %p120
      %p123 = scmp.ne.s32.totalorder %s108, %s122
      %p124 = scmp.eq.s32.totalorder %s21, 0
      %p125 = por %p123, %p124
      %s127 = sadd.s32 %s126, 1
      %p130 = scmp.eq.s32.totalorder %s15, 1
      %p131 = scmp.ne.s32.totalorder %s126, %s128
      %p132 = scmp.eq.s32.totalorder %s15, 0
      %p133 = por %p131, %p132
      %p134 = scmp.ne.s32.totalorder %s126, %s128
      %p135 = scmp.eq.s32.totalorder %s20, 1
      %p136 = por %p134, %p135
      %p137 = scmp.ne.s32.totalorder %s128, %s129
      %p138 = scmp.eq.s32.totalorder %s20, 0
      %p139 = por %p137, %p138
      %p140 = scmp.ne.s32.totalorder %s128, %s129
      %p141 = scmp.eq.s32.totalorder %s21, 1
      %p142 = por %p140, %p141
      %p144 = scmp.ne.s32.totalorder %s129, %s143
      %p145 = scmp.eq.s32.totalorder %s21, 0
      %p146 = por %p144, %p145
      %s147 = ssub.s32 %s22, %s34
      %s148 = ssub.s32 %s23, %s30
      %s149 = sor.u32 %s147, %s148
      %p150 = scmp.eq.s32.totalorder %s149, 0
      %s152 = sadd.s32 %s151, 1
      %s153 = scalar_select %p150, %s151, %s152
      %p156 = pneg %p150
      %p157 = scmp.eq.s32.totalorder %s15, 1
      %p158 = por %p156, %p157
      %p159 = scmp.ne.s32.totalorder %s151, %s154
      %p160 = scmp.eq.s32.totalorder %s15, 0
      %p161 = por %p159, %p160
      %p162 = scmp.ne.s32.totalorder %s151, %s154
      %p163 = scmp.eq.s32.totalorder %s20, 1
      %p164 = por %p162, %p163
      %p165 = scmp.ne.s32.totalorder %s154, %s155
      %p166 = scmp.eq.s32.totalorder %s20, 0
      %p167 = por %p165, %p166
      %p168 = scmp.ne.s32.totalorder %s154, %s155
      %p169 = scmp.eq.s32.totalorder %s21, 1
      %p170 = por %p168, %p169
      %p172 = scmp.ne.s32.totalorder %s155, %s171
      %p173 = scmp.eq.s32.totalorder %s21, 0
      %p174 = por %p172, %p173
      %p175 = scmp.le.s32.totalorder 1, %s15
      %p176 = scmp.lt.s32.totalorder %s15, 3
      %p177 = pnand %p175, %p176
      %p178 = pneg %p177
      // Predicated region
      $region9: #{tpu_custom_call.1} parent=5 // pred_check
        _
      $region10: #{tpu_custom_call.1} parent=5 // pred_check_branch
        %180 = sbr.rel (%p177) target = $region12
      $region11: #{tpu_custom_call.1} parent=5 // pred_region
        %s181 = ssub.s32 %s15, 1
        // Predicated region
        $region13: #{tpu_custom_call.1} parent=11 // pred_check
          %p182 = pneg %p76
        $region14: #{tpu_custom_call.1} parent=11 // pred_check_branch
          %184 = sbr.rel (%p182) target = $region16
        $region15: #{tpu_custom_call.1} parent=11 // pred_region
          %s186 = ssub.s32 256, 256
          %187 = vsyncadd [#allocation5], %s186
          %s188 = sshll.u32 [#allocation4], 4
          %s189 = int_to_ptr.vmem [resolvable:$true] %s188
          %194 = dma.hbm_to_vmem [thread:$0]  %s1, 256, %s189, [#allocation5], 128, 128, 8
        $region16: #{tpu_custom_call.1} parent=11 // pred_fallthru
          _
        // Predicated region
        $region17: #{tpu_custom_call.1} parent=11 // pred_check
          %p195 = pneg %p97
        $region18: #{tpu_custom_call.1} parent=11 // pred_check_branch
          %197 = sbr.rel (%p195) target = $region20
        $region19: #{tpu_custom_call.1} parent=11 // pred_region
          _
        $region20: #{tpu_custom_call.1} parent=11 // pred_fallthru
          _
        // Predicated region
        $region21: #{tpu_custom_call.1} parent=11 // pred_check
          %p198 = pneg %p118
        $region22: #{tpu_custom_call.1} parent=11 // pred_check_branch
          %200 = sbr.rel (%p198) target = $region24
        $region23: #{tpu_custom_call.1} parent=11 // pred_region
          _
        $region24: #{tpu_custom_call.1} parent=11 // pred_fallthru
          _
        // Predicated region
        $region25: #{tpu_custom_call.1} parent=11 // pred_check
          %p201 = pneg %p139
        $region26: #{tpu_custom_call.1} parent=11 // pred_check_branch
          %203 = sbr.rel (%p201) target = $region28
        $region27: #{tpu_custom_call.1} parent=11 // pred_region
          _
        $region28: #{tpu_custom_call.1} parent=11 // pred_fallthru
          _
      $region12: #{tpu_custom_call.1} parent=5 // pred_fallthru
        _
      %p204 = scmp.lt.s32.totalorder %s15, 2
      // Predicated region
      $region29: #{tpu_custom_call.1} parent=5 // pred_check
        %p205 = pneg %p204
      $region30: #{tpu_custom_call.1} parent=5 // pred_check_branch
        %207 = sbr.rel (%p205) target = $region32
      $region31: #{tpu_custom_call.1} parent=5 // pred_region
        // Predicated region
        $region33: #{tpu_custom_call.1} parent=31 // pred_check
          %p208 = pneg %p49
        $region34: #{tpu_custom_call.1} parent=31 // pred_check_branch
          %210 = sbr.rel (%p208) target = $region36
        $region35: #{tpu_custom_call.1} parent=31 // pred_region
          %p211 = scmp.lt.s32.totalorder %s22, 1
          %s212 = scalar_select %p211, %s22, 1
          %p213 = scmp.lt.s32.totalorder %s23, 0
          %s214 = scalar_select %p213, %s23, 0
          %s215 = sadd.s32 %s214, %s212
          %s216 = smul.addr %s215, 8
          %s217 = scalar_lea.vmem %s0, %s216
        $region36: #{tpu_custom_call.1} parent=31 // pred_fallthru
          _
      $region32: #{tpu_custom_call.1} parent=5 // pred_fallthru
        _
      %p218 = scmp.le.s32.totalorder 1, %s15
      %p219 = scmp.lt.s32.totalorder %s15, 3
      %p220 = pnand %p218, %p219
      %p221 = pneg %p220
      // Predicated region
      $region37: #{tpu_custom_call.1} parent=5 // pred_check
        _
      $region38: #{tpu_custom_call.1} parent=5 // pred_check_branch
        %223 = sbr.rel (%p220) target = $region40
      $region39: #{tpu_custom_call.1} parent=5 // pred_region
        %s224 = ssub.s32 %s15, 1
        // Predicated region
        $region41: #{tpu_custom_call.1} parent=39 // pred_check
          %p225 = pneg %p76
        $region42: #{tpu_custom_call.1} parent=39 // pred_check_branch
          %227 = sbr.rel (%p225) target = $region44
        $region43: #{tpu_custom_call.1} parent=39 // pred_region
          %228 = dma.done [#allocation5], 256
        $region44: #{tpu_custom_call.1} parent=39 // pred_fallthru
          _
        %p229 = scmp.lt.s32.totalorder %s24, 1
        %s230 = scalar_select %p229, %s24, 1
        %p231 = scmp.lt.s32.totalorder %s25, 0
        %s232 = scalar_select %p231, %s25, 0
        %s233 = sadd.s32 %s232, %s230
        %s234 = smul.addr %s233, 8
        %s235 = scalar_lea.vmem %s0, %s234
        %p236 = pneg %p55
        %p237 = pneg %p52
        %p238 = pneg %p76
        %p239 = pneg %p73
        %p240 = pneg %p97
        %p241 = pneg %p94
        %p242 = pneg %p118
        %p243 = pneg %p115
        %p244 = pneg %p139
        %p245 = pneg %p136
        %p246 = pneg %p167
        %p247 = pneg %p164
        %s248 = sand.u32 %s154, 1
        %s249 = scalar_lea.sflag [#allocation6], %s248
        %s250 = sand.u32 %s154, 1
        %s251 = smul.addr %s250, 8
        %s252 = scalar_lea.vmem [#allocation7], %s251
        %p253 = scmp.lt.s32.totalorder %s24, 1
        %s254 = scalar_select %p253, %s24, 1
        %p255 = scmp.lt.s32.totalorder %s25, 0
        %s256 = scalar_select %p255, %s25, 0
        %s257 = sadd.s32 %s256, %s254
        %s258 = smul.addr %s257, 8
        %s259 = scalar_lea.vmem %s0, %s258
        %p260 = scmp.eq.s32.totalorder %s25, 0
        // Predicated region
        $region45: #{tpu_custom_call.1} parent=39 // pred_check
          %p261 = pneg %p260
        $region46: #{tpu_custom_call.1} parent=39 // pred_check_branch
          %263 = sbr.rel (%p261) target = $region48
        $region47: #{tpu_custom_call.1} parent=39 // pred_region
          %vm264 = vcmask 1048544
          %265 = vst.msk [vmem:[#allocation2] sm:$0xff] %vm264, 0.0
          %266 = vst.msk [vmem:[#allocation3] sm:$0xff] %vm264, 0.0
        $region48: #{tpu_custom_call.1} parent=39 // pred_fallthru
          _
        %v267 = vld [vmem:[%s259] sm:$0xff]
        %v268 = vld [vmem:[%s2] sm:$0xff]
        %v269 = vld [vmem:[%s2 + $0x8] sm:$0xff]
        %270 = vst [vmem:[#allocation2 + $0x8] sm:$0xff] %v267
        %v271 = vld [vmem:[#allocation2] sm:$0xff]
        %v272 = vld [vmem:[#allocation2 + $0x8] sm:$0xff]
        %275 = vrot.lane.b32.xlu0 %v271, 126
        %v276 = vpop.permute.xlu0 %275
        %277 = vrot.lane.b32.xlu0 %v272, 126
        %v278 = vpop.permute.xlu0 %277
        %vm279 = vcmask 1031168
        %v280 = vsel %vm279, %v276, %v278
        %281 = vrot.lane.b32.xlu0 %v272, 124
        %v282 = vpop.permute.xlu0 %281
        %v283 = vld [vmem:[#allocation4] sm:$0xff]
        %v284 = vld [vmem:[#allocation4 + $0x8] sm:$0xff]
        %286 = vset.pattern.permute.xlu0 0
        %287 = vperm.xlu0 %286, %v268
        %v288 = vpop.permute.xlu0 %287
        %291 = vset.pattern.permute.xlu0 0
        %292 = vperm.xlu0 %291, %v269
        %v293 = vpop.permute.xlu0 %292
        %295 = vrot.lane.b32.xlu0 %v271, 4
        %v296 = vpop.permute.xlu0 %295
        %297 = vrot.lane.b32.xlu0 %v272, 4
        %v298 = vpop.permute.xlu0 %297
        %299 = vrot.lane.b32.xlu0 %v280, 4
        %v300 = vpop.permute.xlu0 %299
        %301 = vrot.lane.b32.xlu0 %v278, 4
        %v302 = vpop.permute.xlu0 %301
        %303 = vrot.lane.b32.xlu0 %v282, 4
        %v304 = vpop.permute.xlu0 %303
        %vm305 = vcmask 31744
        %v306 = vsel %vm305, %v296, %v298
        %v307 = vsel %vm305, %v300, %v302
        %vm311 = vcmask 195584
        %v313 = vsel %vm311, %v283, 0
        %v316 = vsel %vm311, %v284, 0
        %318 = vmatprep.subr.mxu0 0.0
        %319 = vmatpush1.msra.mxu0 0.0
        %320 = vmatprep.subr.mxu0 0.0
        %321 = vmatpush1.msra.mxu0 0.0
        %322 = vmatprep.subr.mxu0 0.0
        %323 = vmatpush1.msra.mxu0 0.0
        %324 = vmatprep.subr.mxu0 0.0
        %325 = vmatpush1.msra.mxu0 0.0
        %326 = vmatprep.subr.mxu0 0.0
        %327 = vmatpush1.msra.mxu0 0.0
        %328 = vmatprep.subr.mxu0 0.0
        %329 = vmatpush1.msra.mxu0 0.0
        %330 = vmatprep.subr.mxu0 0.0
        %331 = vmatpush1.msra.mxu0 0.0
        %332 = vmatprep.subr.mxu0 0.0
        %333 = vmatpush1.msra.mxu0 0.0
        %334 = vmatprep.subr.mxu0 0.0
        %335 = vmatpush1.msra.mxu0 0.0
        %336 = vmatprep.subr.mxu0 0.0
        %337 = vmatpush1.msra.mxu0 0.0
        %338 = vmatprep.subr.mxu0 0.0
        %339 = vmatpush1.msra.mxu0 0.0
        %340 = vmatprep.subr.mxu0 0.0
        %341 = vmatpush1.msra.mxu0 0.0
        %342 = vmatprep.subr.mxu0 0.0
        %343 = vmatpush1.msra.mxu0 0.0
        %344 = vmatprep.subr.mxu0 0.0
        %345 = vmatpush1.msra.mxu0 %v304
        %346 = vmatprep.subr.mxu0 0.0
        %347 = vmatpush1.msra.mxu0 %v307
        %348 = vmatprep.subr.mxu0 0.0
        %349 = vmatpush1.msra.mxu0 %v306
        %350 = vmatprep.subr.mxu0 0.0
        %351 = vmatpush2.msra.mxu0 0.0
        %352 = vmatprep.subr.mxu0 0.0
        %353 = vmatpush2.msra.mxu0 0.0
        %354 = vmatprep.subr.mxu0 0.0
        %355 = vmatpush2.msra.mxu0 0.0
        %356 = vmatprep.subr.mxu0 0.0
        %357 = vmatpush2.msra.mxu0 0.0
        %358 = vmatprep.subr.mxu0 0.0
        %359 = vmatpush2.msra.mxu0 0.0
        %360 = vmatprep.subr.mxu0 0.0
        %361 = vmatpush2.msra.mxu0 0.0
        %362 = vmatprep.subr.mxu0 0.0
        %363 = vmatpush2.msra.mxu0 0.0
        %364 = vmatprep.subr.mxu0 0.0
        %365 = vmatpush2.msra.mxu0 0.0
        %366 = vmatprep.subr.mxu0 0.0
        %367 = vmatpush2.msra.mxu0 0.0
        %368 = vmatprep.subr.mxu0 0.0
        %369 = vmatpush2.msra.mxu0 0.0
        %370 = vmatprep.subr.mxu0 0.0
        %371 = vmatpush2.msra.mxu0 0.0
        %372 = vmatprep.subr.mxu0 0.0
        %373 = vmatpush2.msra.mxu0 0.0
        %374 = vmatprep.subr.mxu0 0.0
        %375 = vmatpush2.msra.mxu0 0.0
        %376 = vmatprep.subr.mxu0 0.0
        %377 = vmatpush2.msra.mxu0 0.0
        %378 = vmatprep.subr.mxu0 0.0
        %379 = vmatpush2.msra.mxu0 0.0
        %380 = vmatprep.subr.mxu0 0.0
        %381 = vmatpush2.msra.mxu0 0.0
        %382 = vmatprep.mubr.f32.mxu0 0.0
        %383 = vmatmul.mubr.f32.gmra.mxu0 %v313
        %v384 = vpop.f32.mrf.mxu0
        %v385 = vadd.f32 %v288, %v384
        %v386 = vpop.f32.mrf.mxu0
        %387 = vmatprep.mubr.f32.mxu0 0.0
        %388 = vmatmul.mubr.f32.gmra.mxu0 %v316
        %v389 = vpop.f32.mrf.mxu0
        %v390 = vadd.f32 %v293, %v389
        %v391 = vpop.f32.mrf.mxu0
        %392 = vdwg.mxu0
        %vm393 = vcmask 1048544
        %394 = vst.msk [vmem:[#allocation2] sm:$0xff] %vm393, %v272
        %v395 = vmax.f32 %v385, 0.0
        %v396 = vld [vmem:[%s4] sm:$0xff]
        %397 = vst [vmem:[#allocation3 + $0x8] sm:$0xff] %v395
        %v398 = vld [vmem:[#allocation3] sm:$0xff]
        %v399 = vld [vmem:[#allocation3 + $0x8] sm:$0xff]
        %402 = vrot.lane.b32.xlu0 %v398, 126
        %v403 = vpop.permute.xlu0 %402
        %404 = vrot.lane.b32.xlu0 %v399, 126
        %v405 = vpop.permute.xlu0 %404
        %v406 = vsel %vm279, %v403, %v405
        %407 = vrot.lane.b32.xlu0 %v399, 124
        %v408 = vpop.permute.xlu0 %407
        %v409 = vld [vmem:[%s3] sm:$0xff]
        %411 = vset.pattern.permute.xlu0 0
        %412 = vperm.xlu0 %411, %v396
        %v413 = vpop.permute.xlu0 %412
        %415 = vrot.lane.b32.xlu0 %v398, 4
        %v416 = vpop.permute.xlu0 %415
        %417 = vrot.lane.b32.xlu0 %v399, 4
        %v418 = vpop.permute.xlu0 %417
        %419 = vrot.lane.b32.xlu0 %v406, 4
        %v420 = vpop.permute.xlu0 %419
        %421 = vrot.lane.b32.xlu0 %v405, 4
        %v422 = vpop.permute.xlu0 %421
        %423 = vrot.lane.b32.xlu0 %v408, 4
        %v424 = vpop.permute.xlu0 %423
        %v425 = vsel %vm305, %v416, %v418
        %v426 = vsel %vm305, %v420, %v422
        %v431 = vsel %vm311, %v409, 0
        %433 = vmatprep.subr.mxu0 0.0
        %434 = vmatpush1.msra.mxu0 0.0
        %435 = vmatprep.subr.mxu0 0.0
        %436 = vmatpush1.msra.mxu0 0.0
        %437 = vmatprep.subr.mxu0 0.0
        %438 = vmatpush1.msra.mxu0 0.0
        %439 = vmatprep.subr.mxu0 0.0
        %440 = vmatpush1.msra.mxu0 0.0
        %441 = vmatprep.subr.mxu0 0.0
        %442 = vmatpush1.msra.mxu0 0.0
        %443 = vmatprep.subr.mxu0 0.0
        %444 = vmatpush1.msra.mxu0 0.0
        %445 = vmatprep.subr.mxu0 0.0
        %446 = vmatpush1.msra.mxu0 0.0
        %447 = vmatprep.subr.mxu0 0.0
        %448 = vmatpush1.msra.mxu0 0.0
        %449 = vmatprep.subr.mxu0 0.0
        %450 = vmatpush1.msra.mxu0 0.0
        %451 = vmatprep.subr.mxu0 0.0
        %452 = vmatpush1.msra.mxu0 0.0
        %453 = vmatprep.subr.mxu0 0.0
        %454 = vmatpush1.msra.mxu0 0.0
        %455 = vmatprep.subr.mxu0 0.0
        %456 = vmatpush1.msra.mxu0 0.0
        %457 = vmatprep.subr.mxu0 0.0
        %458 = vmatpush1.msra.mxu0 0.0
        %459 = vmatprep.subr.mxu0 0.0
        %460 = vmatpush1.msra.mxu0 %v424
        %461 = vmatprep.subr.mxu0 0.0
        %462 = vmatpush1.msra.mxu0 %v426
        %463 = vmatprep.subr.mxu0 0.0
        %464 = vmatpush1.msra.mxu0 %v425
        %465 = vmatprep.subr.mxu0 0.0
        %466 = vmatpush2.msra.mxu0 0.0
        %467 = vmatprep.subr.mxu0 0.0
        %468 = vmatpush2.msra.mxu0 0.0
        %469 = vmatprep.subr.mxu0 0.0
        %470 = vmatpush2.msra.mxu0 0.0
        %471 = vmatprep.subr.mxu0 0.0
        %472 = vmatpush2.msra.mxu0 0.0
        %473 = vmatprep.subr.mxu0 0.0
        %474 = vmatpush2.msra.mxu0 0.0
        %475 = vmatprep.subr.mxu0 0.0
        %476 = vmatpush2.msra.mxu0 0.0
        %477 = vmatprep.subr.mxu0 0.0
        %478 = vmatpush2.msra.mxu0 0.0
        %479 = vmatprep.subr.mxu0 0.0
        %480 = vmatpush2.msra.mxu0 0.0
        %481 = vmatprep.subr.mxu0 0.0
        %482 = vmatpush2.msra.mxu0 0.0
        %483 = vmatprep.subr.mxu0 0.0
        %484 = vmatpush2.msra.mxu0 0.0
        %485 = vmatprep.subr.mxu0 0.0
        %486 = vmatpush2.msra.mxu0 0.0
        %487 = vmatprep.subr.mxu0 0.0
        %488 = vmatpush2.msra.mxu0 0.0
        %489 = vmatprep.subr.mxu0 0.0
        %490 = vmatpush2.msra.mxu0 0.0
        %491 = vmatprep.subr.mxu0 0.0
        %492 = vmatpush2.msra.mxu0 0.0
        %493 = vmatprep.subr.mxu0 0.0
        %494 = vmatpush2.msra.mxu0 0.0
        %495 = vmatprep.subr.mxu0 0.0
        %496 = vmatpush2.msra.mxu0 0.0
        %497 = vmatprep.mubr.f32.mxu0 0.0
        %498 = vmatmul.mubr.f32.gmra.mxu0 %v431
        %v499 = vpop.f32.mrf.mxu0
        %v500 = vadd.f32 %v413, %v499
        %v501 = vpop.f32.mrf.mxu0
        %502 = vdwg.mxu0
        %503 = vst.msk [vmem:[#allocation3] sm:$0xff] %vm393, %v399
        %v504 = vmax.f32 %v500, 0.0
        %v505 = vadd.f32 %v504, %v390
        %v506 = vmax.f32 %v505, 0.0
        %507 = vst [vmem:[%s252] sm:$0xff] %v506
        %s508 = sand.u32 %s154, 1
        %s509 = scalar_lea.sflag [#allocation6], %s508
        %s510 = sand.u32 %s154, 1
        %s511 = smul.addr %s510, 8
        %s512 = scalar_lea.vmem [#allocation7], %s511
        // Predicated region
        $region49: #{tpu_custom_call.1} parent=39 // pred_check
          %p513 = pneg %p164
        $region50: #{tpu_custom_call.1} parent=39 // pred_check_branch
          %515 = sbr.rel (%p513) target = $region52
        $region51: #{tpu_custom_call.1} parent=39 // pred_region
          %s517 = ssub.s32 128, 128
          %518 = vsyncadd %s509, %s517
          %s519 = sadd.s32 %s25, %s24
          %s520 = smul.addr %s519, 128
          %s521 = scalar_lea.hbm %s5, %s520
          %s523 = sshll.u32 %s512, 4
          %s524 = int_to_ptr.vmem [resolvable:$true] %s523
          %526 = dma.vmem_to_hbm [thread:$0]  %s524, 128, %s521, %s509
        $region52: #{tpu_custom_call.1} parent=39 // pred_fallthru
          _
      $region40: #{tpu_custom_call.1} parent=5 // pred_fallthru
        _
      %p527 = scmp.le.s32.totalorder 2, %s15
      // Predicated region
      $region53: #{tpu_custom_call.1} parent=5 // pred_check
        %p528 = pneg %p527
      $region54: #{tpu_custom_call.1} parent=5 // pred_check_branch
        %530 = sbr.rel (%p528) target = $region56
      $region55: #{tpu_custom_call.1} parent=5 // pred_region
        %s531 = ssub.s32 %s15, 2
        // Predicated region
        $region57: #{tpu_custom_call.1} parent=55 // pred_check
          %p532 = pneg %p170
        $region58: #{tpu_custom_call.1} parent=55 // pred_check_branch
          %534 = sbr.rel (%p532) target = $region60
        $region59: #{tpu_custom_call.1} parent=55 // pred_region
          %s535 = sand.u32 %s155, 1
          %s536 = scalar_lea.sflag [#allocation6], %s535
          %s537 = sand.u32 %s155, 1
          %s538 = smul.addr %s537, 8
          %s539 = scalar_lea.vmem [#allocation7], %s538
          %540 = dma.done %s536, 128
        $region60: #{tpu_custom_call.1} parent=55 // pred_fallthru
          _
      $region56: #{tpu_custom_call.1} parent=5 // pred_fallthru
        _
    $region6: #{tpu_custom_call.1} parent=1 // loop_footer
      %s19 = sadd.s32 1, %s15
    $region7: #{tpu_custom_call.1} parent=1 // loop_footer_branch
      %14 = sbr.rel target = $region3
    $region8: #{tpu_custom_call.1} parent=1 // loop_exit
      _
    %541 = vsyncpa [#allocation5], 1
    %s542 = scalar_lea.sflag [#allocation5], 1
    %543 = vsyncpa %s542, 1
    %544 = vsyncpa [#allocation6], 1
    %s545 = scalar_lea.sflag [#allocation6], 1
    %546 = vsyncpa %s545, 1

</llo_original>
